<compile_context>
chip_gen: v7x
topology: tpu7x:2x2x1
jax: 0.10.0
libtpu: 0.0.40
codegen_flags: <defaults>
</compile_context>

<pallas_src>
import functools

import jax
import jax.numpy as jnp
from jax.experimental import pallas as pl
from jax.experimental.pallas import tpu as pltpu


def _upsample1d_kernel(x_ref, w_ref, b_ref, out_ref):
    """One (batch-block, L-tile) grid step.

    x_ref  : (TB, TLh, C)   channels-last halo window; row r holds x[:, j*TL + r - 1]
                            (zeros outside [0, L))
    w_ref  : (C, 4C)        fused taps: w_ref[ci, k*C + co] == torch_weight[ci, co, k]
    b_ref  : (1, 1, C)      bias
    out_ref: (TB, 2, TL, C) out_ref[:, 0] -> even outputs (t = 2m),
                            out_ref[:, 1] -> odd  outputs (t = 2m + 1)
    """
    TB, TLh, C = x_ref.shape
    TL = out_ref.shape[2]

    # One fused MXU matmul over all 4 taps and all TB batch rows.
    # TLh % 8 == 0 -> these reshapes are layout-preserving (no relayout).
    x2d = x_ref[...].reshape(TB * TLh, C)
    y = jnp.dot(x2d, w_ref[...], preferred_element_type=jnp.float32)
    y = y.reshape(TB, TLh, 4 * C)

    bias = b_ref[...]                              # (1, 1, C), broadcasts

    # Window row r holds x[j*TL + r - 1], so the +-1 input taps become static
    # row offsets 0/1/2 applied to the f32 result (sublane shifts, XLU slot).
    even = y[:, 1:TL + 1, 1 * C:2 * C] + y[:, 0:TL, 3 * C:4 * C] + bias
    odd = y[:, 1:TL + 1, 2 * C:3 * C] + y[:, 2:TL + 2, 0 * C:1 * C] + bias

    # Two lane-dense (C on lanes) full-slab stores.
    out_ref[:, 0, :, :] = even.astype(out_ref.dtype)
    out_ref[:, 1, :, :] = odd.astype(out_ref.dtype)


def _pick_l_tile(L, max_tile=512):
    """Largest L-tile <= max_tile that divides L and is a multiple of 8 (else L)."""
    if L <= max_tile:
        return L
    for t in range(max_tile - max_tile % 8, 7, -8):
        if L % t == 0:
            return t
    return L


@functools.partial(jax.jit, static_argnames=("l_tile", "batch_tile"))
def upsample1d(x, weight, bias, *, l_tile=None, batch_tile=None):
    """ConvTranspose1d(dim, dim, 4, stride=2, padding=1)  ==  Upsample1d.forward.

    x      : (B, C, L)  float32 (PyTorch NCL layout)
    weight : (C, C, 4)  float32 (PyTorch ConvTranspose1d weight: (in, out, k))
    bias   : (C,)       float32
    returns: (B, C, 2L) float32
    """
    B, C, L = x.shape
    assert weight.shape == (C, C, 4), weight.shape
    assert bias.shape == (C,), bias.shape
    dtype = x.dtype

    # ---- static tiling decisions -------------------------------------------
    TL = _pick_l_tile(L) if l_tile is None else l_tile
    assert L % TL == 0 and (TL == L or TL % 8 == 0), (L, TL)
    nT = L // TL
    TLh = ((TL + 2 + 7) // 8) * 8            # halo window rows (1 left + TL + 1 right), 8-aligned

    # Batch-block so one fused matmul has M = TB*TLh ~ a few hundred rows.
    TB = batch_tile if batch_tile is not None else max(1, min(B, 512 // TLh))
    nB = pl.cdiv(B, TB)
    B_pad = nB * TB

    # ---- XLA-side glue: single pass building channels-last halo windows -----
    # TODO(synk): an NCL-native kernel with an in-kernel interleaved (stride-2)
    # lane store would remove this pass and the final transpose, but Mosaic has
    # no robust lowering for that store pattern today.
    x_cl = jnp.transpose(x, (0, 2, 1))                               # (B, L, C)
    if B_pad != B:
        x_cl = jnp.pad(x_cl, ((0, B_pad - B), (0, 0), (0, 0)))
    x_halo = jnp.pad(x_cl, ((0, 0), (1, TLh - TL - 1), (0, 0)))      # row p holds x[p-1]
    x_win = jnp.stack(
        [x_halo[:, j * TL: j * TL + TLh, :] for j in range(nT)], axis=1
    )                                                                # (B_pad, nT, TLh, C)

    # Fused per-tap weights: w_all[ci, k*C + co] = weight[ci, co, k]
    w_all = jnp.transpose(weight, (0, 2, 1)).reshape(C, 4 * C).astype(dtype)
    b3 = bias.reshape(1, 1, C).astype(dtype)

    flops = 2 * B_pad * nT * TLh * C * 4 * C
    bytes_accessed = (x_win.size + B_pad * 2 * L * C + w_all.size + b3.size) * dtype.itemsize

    out = pl.pallas_call(
        _upsample1d_kernel,
        out_shape=jax.ShapeDtypeStruct((B_pad, 2, L, C), dtype),
        grid_spec=pltpu.PrefetchScalarGridSpec(
            num_scalar_prefetch=0,
            grid=(nB, nT),
            in_specs=[
                # halo window for this (batch-block, L-tile)
                pl.BlockSpec((TB, None, TLh, C), lambda bi, j: (bi, j, 0, 0)),
                # weights / bias: constant index_map -> fetched once, stay resident
                pl.BlockSpec((C, 4 * C), lambda bi, j: (0, 0)),
                pl.BlockSpec((1, 1, C), lambda bi, j: (0, 0, 0)),
            ],
            out_specs=pl.BlockSpec((TB, 2, TL, C), lambda bi, j: (bi, 0, j, 0)),
        ),
        compiler_params=pltpu.CompilerParams(
            # batch-blocks and L-tiles are independent -> both TCs get work on v7x
            dimension_semantics=("parallel", "parallel"),
        ),
        cost_estimate=pl.CostEstimate(
            flops=flops, transcendentals=0, bytes_accessed=bytes_accessed),
    )(x_win, w_all, b3)

    out = out[:B]                                  # drop batch padding
    # (B, 2, L, C) -> (B, C, L, 2) -> (B, C, 2L): the even/odd interleave fuses
    # into the single layout-restore transpose back to NCL.
    return jnp.transpose(out, (0, 3, 2, 1)).reshape(B, C, 2 * L)


def upsample1d_ref(x, weight, bias):
    """Pure-JAX reference: direct scatter-form definition of ConvTranspose1d."""
    B, C_in, L = x.shape
    _, C_out, K = weight.shape
    stride, padding = 2, 1
    L_out = (L - 1) * stride - 2 * padding + K
    out = jnp.zeros((B, C_out, L_out), jnp.float32)
    for l in range(L):
        for k in range(K):
            t = l * stride - padding + k
            if 0 <= t < L_out:
                out = out.at[:, :, t].add(
                    jnp.einsum("bi,io->bo", x[:, :, l], weight[:, :, k],
                               precision=jax.lax.Precision.HIGHEST))
    return out + bias[None, :, None]


if __name__ == "__main__":
    key = jax.random.PRNGKey(0)
    kx, kw, kb = jax.random.split(key, 3)

    # Primary case (small shapes consistent with the module): B=2, dim=32, L=16.
    B, dim, L = 2, 32, 16
    x = jax.random.normal(kx, (B, dim, L), dtype=jnp.float32)
    weight = jax.random.normal(kw, (dim, dim, 4), dtype=jnp.float32) * 0.1
    bias = jax.random.normal(kb, (dim,), dtype=jnp.float32) * 0.1

    out = jax.block_until_ready(upsample1d(x, weight, bias))
    ref = upsample1d_ref(x, weight, bias)
    assert out.shape == (B, dim, 2 * L), out.shape
    err = float(jnp.max(jnp.abs(out - ref)))
    assert jnp.allclose(out, ref, atol=2e-2, rtol=2e-2), f"mismatch, max |err| = {err}"

    # Secondary case: exercises the L-tile grid axis (nT=4) and batch padding (B=3, TB=2).
    B2, dim2, L2 = 3, 16, 64
    kx2, kw2, kb2 = jax.random.split(jax.random.PRNGKey(1), 3)
    x2 = jax.random.normal(kx2, (B2, dim2, L2), dtype=jnp.float32)
    w2 = jax.random.normal(kw2, (dim2, dim2, 4), dtype=jnp.float32) * 0.1
    b2 = jax.random.normal(kb2, (dim2,), dtype=jnp.float32) * 0.1

    out2 = jax.block_until_ready(upsample1d(x2, w2, b2, l_tile=16, batch_tile=2))
    ref2 = upsample1d_ref(x2, w2, b2)
    assert out2.shape == (B2, dim2, 2 * L2), out2.shape
    err2 = float(jnp.max(jnp.abs(out2 - ref2)))
    assert jnp.allclose(out2, ref2, atol=2e-2, rtol=2e-2), f"mismatch, max |err| = {err2}"

    print("KERNEL_OK")
</pallas_src>

<mosaic_0001>
module attributes {stable_mosaic.version = 11 : i64} {
  func.func @_upsample1d_kernel(%arg0: i32, %arg1: i32, %arg2: memref<2x1x24x32xf32, #tpu.memory_space<vmem>>, %arg3: memref<32x128xf32, #tpu.memory_space<vmem>>, %arg4: memref<1x1x32xf32, #tpu.memory_space<vmem>>, %arg5: memref<2x2x16x32xf32, #tpu.memory_space<vmem>>) attributes {dimension_semantics = [#tpu.dimension_semantics<parallel>, #tpu.dimension_semantics<parallel>], iteration_bounds = array<i64: 1, 1>, scalar_prefetch = 0 : i64, scratch_operands = 0 : i64, tpu.core_type = #tpu.core_type<tc>, window_params = [{transform_indices = @transform_0, window_bounds = array<i64: 2, 1, 24, 32>}, {pipeline_mode = #tpu.pipeline_mode<synchronous>, transform_indices = @transform_1, window_bounds = array<i64: 32, 128>}, {pipeline_mode = #tpu.pipeline_mode<synchronous>, transform_indices = @transform_2, window_bounds = array<i64: 1, 1, 32>}, {transform_indices = @transform_3, window_bounds = array<i64: 2, 2, 16, 32>}]} {
    %c0 = arith.constant 0 : index
    %c0_0 = arith.constant 0 : index
    %c0_1 = arith.constant 0 : index
    %c0_2 = arith.constant 0 : index
    %0 = vector.load %arg2[%c0, %c0_0, %c0_1, %c0_2] : memref<2x1x24x32xf32, #tpu.memory_space<vmem>>, vector<2x1x24x32xf32>
    %1 = vector.shape_cast %0 : vector<2x1x24x32xf32> to vector<2x24x32xf32>
    %2 = vector.shape_cast %1 : vector<2x24x32xf32> to vector<48x32xf32>
    %c0_3 = arith.constant 0 : index
    %c0_4 = arith.constant 0 : index
    %3 = vector.load %arg3[%c0_3, %c0_4] : memref<32x128xf32, #tpu.memory_space<vmem>>, vector<32x128xf32>
    %cst = arith.constant dense<0.000000e+00> : vector<48x128xf32>
    %4 = tpu.matmul %2, %3, %cst {dimension_numbers = #tpu.dot_dimension_numbers<[1], [0], [0], [1], [0, 0, 1, 1], [], []>} : vector<48x32xf32>, vector<32x128xf32>, vector<48x128xf32> -> vector<48x128xf32>
    %5 = vector.shape_cast %4 : vector<48x128xf32> to vector<2x24x128xf32>
    %c0_5 = arith.constant 0 : index
    %c0_6 = arith.constant 0 : index
    %c0_7 = arith.constant 0 : index
    %6 = vector.load %arg4[%c0_5, %c0_6, %c0_7] : memref<1x1x32xf32, #tpu.memory_space<vmem>>, vector<1x1x32xf32>
    %7 = vector.extract_strided_slice %5 {offsets = [0, 1, 32], sizes = [2, 16, 32], strides = [1, 1, 1]} : vector<2x24x128xf32> to vector<2x16x32xf32>
    %8 = vector.extract_strided_slice %5 {offsets = [0, 0, 96], sizes = [2, 16, 32], strides = [1, 1, 1]} : vector<2x24x128xf32> to vector<2x16x32xf32>
    %9 = arith.addf %7, %8 : vector<2x16x32xf32>
    %10 = vector.broadcast %6 : vector<1x1x32xf32> to vector<2x16x32xf32>
    %11 = arith.addf %9, %10 : vector<2x16x32xf32>
    %12 = vector.extract_strided_slice %5 {offsets = [0, 1, 64], sizes = [2, 16, 32], strides = [1, 1, 1]} : vector<2x24x128xf32> to vector<2x16x32xf32>
    %13 = vector.extract_strided_slice %5 {offsets = [0, 2, 0], sizes = [2, 16, 32], strides = [1, 1, 1]} : vector<2x24x128xf32> to vector<2x16x32xf32>
    %14 = arith.addf %12, %13 : vector<2x16x32xf32>
    %15 = vector.broadcast %6 : vector<1x1x32xf32> to vector<2x16x32xf32>
    %16 = arith.addf %14, %15 : vector<2x16x32xf32>
    %c0_8 = arith.constant 0 : index
    %c0_9 = arith.constant 0 : index
    %c0_10 = arith.constant 0 : index
    %c0_11 = arith.constant 0 : index
    %17 = vector.load %arg5[%c0_8, %c0_9, %c0_10, %c0_11] : memref<2x2x16x32xf32, #tpu.memory_space<vmem>>, vector<2x1x16x32xf32>
    %18 = vector.shape_cast %17 : vector<2x1x16x32xf32> to vector<2x16x32xf32>
    %19 = vector.shape_cast %11 : vector<2x16x32xf32> to vector<2x1x16x32xf32>
    tpu.vector_store %arg5[%c0_8, %c0_9, %c0_10, %c0_11], %19 {strides = array<i32>} : memref<2x2x16x32xf32, #tpu.memory_space<vmem>>, vector<2x1x16x32xf32>,
    %c0_12 = arith.constant 0 : index
    %c1 = arith.constant 1 : index
    %c0_13 = arith.constant 0 : index
    %c0_14 = arith.constant 0 : index
    %20 = vector.load %arg5[%c0_12, %c1, %c0_13, %c0_14] : memref<2x2x16x32xf32, #tpu.memory_space<vmem>>, vector<2x1x16x32xf32>
    %21 = vector.shape_cast %20 : vector<2x1x16x32xf32> to vector<2x16x32xf32>
    %22 = vector.shape_cast %16 : vector<2x16x32xf32> to vector<2x1x16x32xf32>
    tpu.vector_store %arg5[%c0_12, %c1, %c0_13, %c0_14], %22 {strides = array<i32>} : memref<2x2x16x32xf32, #tpu.memory_space<vmem>>, vector<2x1x16x32xf32>,
    return
  }
  func.func @transform_0(%arg0: i32, %arg1: i32) -> (i32, i32, i32, i32) {
    %c0_i32 = arith.constant 0 : i32
    %c0_i32_0 = arith.constant 0 : i32
    %c0_i32_1 = arith.constant 0 : i32
    return %arg0, %arg1, %c0_i32, %c0_i32_0 : i32, i32, i32, i32
  }
  func.func @transform_1(%arg0: i32, %arg1: i32) -> (i32, i32) {
    %c0_i32 = arith.constant 0 : i32
    %c0_i32_0 = arith.constant 0 : i32
    %c0_i32_1 = arith.constant 0 : i32
    return %c0_i32, %c0_i32_0 : i32, i32
  }
  func.func @transform_2(%arg0: i32, %arg1: i32) -> (i32, i32, i32) {
    %c0_i32 = arith.constant 0 : i32
    %c0_i32_0 = arith.constant 0 : i32
    %c0_i32_1 = arith.constant 0 : i32
    %c0_i32_2 = arith.constant 0 : i32
    return %c0_i32, %c0_i32_0, %c0_i32_1 : i32, i32, i32
  }
  func.func @transform_3(%arg0: i32, %arg1: i32) -> (i32, i32, i32, i32) {
    %c0_i32 = arith.constant 0 : i32
    %c0_i32_0 = arith.constant 0 : i32
    %c0_i32_1 = arith.constant 0 : i32
    return %arg0, %c0_i32, %arg1, %c0_i32_0 : i32, i32, i32, i32
  }
}

</mosaic_0001>

<llo_original>
// kernel: upsample1d.1
$region0: #{upsample1d.1}
  #allocation0 [shape = 'u32[]', space=smem, size = 0x4, offset = 0x4, fixed_abs, tag = 'smem constant byte address 0x4 - core index']
  #allocation1 [shape = 'u32[144,128]{1,0:T(1,128)}', space=vmem, size = 0x12000, scoped, tag = 'internal scratch']
  %s0 = inlined_call_operand.vmem [shape: f32[2,1,24,32], index: 0, kind: input, shape index: {}]
  %s1 = inlined_call_operand.vmem [shape: f32[32,128], index: 1, kind: input, shape index: {}]
  %s2 = inlined_call_operand.vmem [shape: f32[1,1,32], index: 2, kind: input, shape index: {}]
  %s3 = inlined_call_operand.vmem [shape: f32[2,2,16,32], index: 3, kind: output, shape index: {}]
  %s4 = sld [smem:[#allocation0]]
  $region22: #{upsample1d.1} parent=0
    _
  %s6 = ssub.s32 1, %s4
  %s7 = scalar_select 0, %s6, %s4
  // Predicated region
  $region2: #{upsample1d.1} parent=0 // pred_check
    _
  $region3: #{upsample1d.1} parent=0 // pred_check_branch
    %9 = sbr.rel (0) target = $region5
  $region4: #{upsample1d.1} parent=0 // pred_region
    _
  $region5: #{upsample1d.1} parent=0 // pred_fallthru
    _
  // Predicated region
  $region6: #{upsample1d.1} parent=0 // pred_check
    _
  $region7: #{upsample1d.1} parent=0 // pred_check_branch
    %11 = sbr.rel (0) target = $region9
  $region8: #{upsample1d.1} parent=0 // pred_region
    _
  $region9: #{upsample1d.1} parent=0 // pred_fallthru
    _
  // Predicated region
  $region10: #{upsample1d.1} parent=0 // pred_check
    _
  $region11: #{upsample1d.1} parent=0 // pred_check_branch
    %13 = sbr.rel (0) target = $region13
  $region12: #{upsample1d.1} parent=0 // pred_region
    _
  $region13: #{upsample1d.1} parent=0 // pred_fallthru
    _
  %v14 = vld [vmem:[%s0] sm:$0xff]
  %v15 = vld [vmem:[%s0 + $0x8] sm:$0xff]
  %v16 = vld [vmem:[%s0 + $0x10] sm:$0xff]
  %v17 = vld [vmem:[%s0 + $0x18] sm:$0xff]
  %v18 = vld [vmem:[%s0 + $0x20] sm:$0xff]
  %v19 = vld [vmem:[%s0 + $0x28] sm:$0xff]
  %v20 = vld [vmem:[%s1] sm:$0xff]
  %v21 = vld [vmem:[%s1 + $0x8] sm:$0xff]
  %v22 = vld [vmem:[%s1 + $0x10] sm:$0xff]
  %v23 = vld [vmem:[%s1 + $0x18] sm:$0xff]
  %vm24 = vcmask 261120
  %v26 = vsel %vm24, %v14, 0
  %v29 = vsel %vm24, %v15, 0
  %v32 = vsel %vm24, %v16, 0
  %v35 = vsel %vm24, %v17, 0
  %v38 = vsel %vm24, %v18, 0
  %v41 = vsel %vm24, %v19, 0
  %43 = vmatprep.subr.mxu0 0.0
  %44 = vmatpush1.msra.mxu0 %v20
  %45 = vmatprep.subr.mxu0 0.0
  %46 = vmatpush1.msra.mxu0 %v21
  %47 = vmatprep.subr.mxu0 0.0
  %48 = vmatpush1.msra.mxu0 %v22
  %49 = vmatprep.subr.mxu0 0.0
  %50 = vmatpush1.msra.mxu0 %v23
  %51 = vmatprep.subr.mxu0 0.0
  %52 = vmatpush1.msra.mxu0 0.0
  %53 = vmatprep.subr.mxu0 0.0
  %54 = vmatpush1.msra.mxu0 0.0
  %55 = vmatprep.subr.mxu0 0.0
  %56 = vmatpush1.msra.mxu0 0.0
  %57 = vmatprep.subr.mxu0 0.0
  %58 = vmatpush1.msra.mxu0 0.0
  %59 = vmatprep.subr.mxu0 0.0
  %60 = vmatpush1.msra.mxu0 0.0
  %61 = vmatprep.subr.mxu0 0.0
  %62 = vmatpush1.msra.mxu0 0.0
  %63 = vmatprep.subr.mxu0 0.0
  %64 = vmatpush1.msra.mxu0 0.0
  %65 = vmatprep.subr.mxu0 0.0
  %66 = vmatpush1.msra.mxu0 0.0
  %67 = vmatprep.subr.mxu0 0.0
  %68 = vmatpush1.msra.mxu0 0.0
  %69 = vmatprep.subr.mxu0 0.0
  %70 = vmatpush1.msra.mxu0 0.0
  %71 = vmatprep.subr.mxu0 0.0
  %72 = vmatpush1.msra.mxu0 0.0
  %73 = vmatprep.subr.mxu0 0.0
  %74 = vmatpush1.msra.mxu0 0.0
  %75 = vmatprep.subr.mxu0 0.0
  %76 = vmatpush1.msra.mxu0 0.0
  %77 = vmatprep.subr.mxu0 0.0
  %78 = vmatpush1.msra.mxu0 0.0
  %79 = vmatprep.subr.mxu0 0.0
  %80 = vmatpush1.msra.mxu0 0.0
  %81 = vmatprep.subr.mxu0 0.0
  %82 = vmatpush1.msra.mxu0 0.0
  %83 = vmatprep.subr.mxu0 0.0
  %84 = vmatpush1.msra.mxu0 0.0
  %85 = vmatprep.subr.mxu0 0.0
  %86 = vmatpush1.msra.mxu0 0.0
  %87 = vmatprep.subr.mxu0 0.0
  %88 = vmatpush1.msra.mxu0 0.0
  %89 = vmatprep.subr.mxu0 0.0
  %90 = vmatpush1.msra.mxu0 0.0
  %91 = vmatprep.subr.mxu0 0.0
  %92 = vmatpush1.msra.mxu0 0.0
  %93 = vmatprep.subr.mxu0 0.0
  %94 = vmatpush1.msra.mxu0 0.0
  %95 = vmatprep.subr.mxu0 0.0
  %96 = vmatpush1.msra.mxu0 0.0
  %97 = vmatprep.subr.mxu0 0.0
  %98 = vmatpush1.msra.mxu0 0.0
  %99 = vmatprep.subr.mxu0 0.0
  %100 = vmatpush1.msra.mxu0 0.0
  %101 = vmatprep.subr.mxu0 0.0
  %102 = vmatpush1.msra.mxu0 0.0
  %103 = vmatprep.subr.mxu0 0.0
  %104 = vmatpush1.msra.mxu0 0.0
  %105 = vmatprep.subr.mxu0 0.0
  %106 = vmatpush1.msra.mxu0 0.0
  %107 = vmatprep.mubr.f32.mxu0 0.0
  %108 = vmatmul.mubr.f32.gmra.mrb[0].mxu0 %v26
  %v109 = vpop.f32.mrb[0].mxu0
  %v110 = vadd.f32 0.0, %v109
  %v111 = vpop.f32.mrb[0].mxu0
  %112 = vmatprep.mubr.f32.mxu0 0.0
  %113 = vmatmul.mubr.f32.gmra.mrb[0].mxu0 %v29
  %v114 = vpop.f32.mrb[0].mxu0
  %v115 = vadd.f32 0.0, %v114
  %v116 = vpop.f32.mrb[0].mxu0
  %117 = vmatprep.mubr.f32.mxu0 0.0
  %118 = vmatmul.mubr.f32.gmra.mrb[0].mxu0 %v32
  %v119 = vpop.f32.mrb[0].mxu0
  %v120 = vadd.f32 0.0, %v119
  %v121 = vpop.f32.mrb[0].mxu0
  %122 = vmatprep.mubr.f32.mxu0 0.0
  %123 = vmatmul.mubr.f32.gmra.mrb[0].mxu0 %v35
  %v124 = vpop.f32.mrb[0].mxu0
  %v125 = vadd.f32 0.0, %v124
  %v126 = vpop.f32.mrb[0].mxu0
  %127 = vmatprep.mubr.f32.mxu0 0.0
  %128 = vmatmul.mubr.f32.gmra.mrb[0].mxu0 %v38
  %v129 = vpop.f32.mrb[0].mxu0
  %v130 = vadd.f32 0.0, %v129
  %v131 = vpop.f32.mrb[0].mxu0
  %132 = vmatprep.mubr.f32.mxu0 0.0
  %133 = vmatmul.mubr.f32.gmra.mrb[0].mxu0 %v41
  %v134 = vpop.f32.mrb[0].mxu0
  %v135 = vadd.f32 0.0, %v134
  %v136 = vpop.f32.mrb[0].mxu0
  %137 = vdwg.mxu0
  %v138 = vld [vmem:[%s2] sm:$0x1]
  %vm143 = vcmask 1040384
  %v144 = vrot.slane %v110, 7
  %v145 = vrot.slane %v115, 7
  %v146 = vsel %vm143, %v144, %v145
  %v147 = vrot.slane %v125, 7
  %v148 = vrot.slane %v130, 7
  %v149 = vsel %vm143, %v147, %v148
  %150 = vrot.lane.b32.xlu0 %v144, 64
  %v151 = vpop.permute.xlu0 %150
  %152 = vrot.lane.b32.xlu0 %v146, 64
  %v153 = vpop.permute.xlu0 %152
  %154 = vrot.lane.b32.xlu0 %v145, 64
  %v155 = vpop.permute.xlu0 %154
  %156 = vrot.lane.b32.xlu0 %v147, 64
  %v157 = vpop.permute.xlu0 %156
  %158 = vrot.lane.b32.xlu0 %v149, 64
  %v159 = vpop.permute.xlu0 %158
  %160 = vrot.lane.b32.xlu0 %v148, 64
  %v161 = vpop.permute.xlu0 %160
  %v168 = vadd.f32 %v110, %v151
  %v169 = vadd.f32 %v115, %v153
  %v170 = vadd.f32 %v120, %v155
  %v171 = vadd.f32 %v125, %v157
  %v172 = vadd.f32 %v130, %v159
  %v173 = vadd.f32 %v135, %v161
  %v175 = vlaneseq
  %v176 = vshrl.u32 %v175, 7
  %v177 = vsub.s32 0, %v176
  %v178 = vrot.slane %v138, %v177
  %179 = vrot.lane.b32.xlu0 %v178, 32
  %v180 = vpop.permute.xlu0 %179
  %v182 = vadd.f32 %v168, %v180
  %v183 = vadd.f32 %v169, %v180
  %v184 = vadd.f32 %v170, %v180
  %v185 = vadd.f32 %v171, %v180
  %v186 = vadd.f32 %v172, %v180
  %v187 = vadd.f32 %v173, %v180
  %vm190 = vcmask 1046528
  %v191 = vrot.slane %v110, 1
  %v192 = vrot.slane %v115, 1
  %v193 = vsel %vm190, %v191, %v192
  %v194 = vrot.slane %v120, 1
  %v195 = vsel %vm190, %v192, %v194
  %v196 = vrot.slane %v125, 1
  %v197 = vrot.slane %v130, 1
  %v198 = vsel %vm190, %v196, %v197
  %v199 = vrot.slane %v135, 1
  %v200 = vsel %vm190, %v197, %v199
  %201 = vrot.lane.b32.xlu0 %v193, 64
  %v202 = vpop.permute.xlu0 %201
  %203 = vrot.lane.b32.xlu0 %v195, 64
  %v204 = vpop.permute.xlu0 %203
  %205 = vrot.lane.b32.xlu0 %v194, 64
  %v206 = vpop.permute.xlu0 %205
  %207 = vrot.lane.b32.xlu0 %v198, 64
  %v208 = vpop.permute.xlu0 %207
  %209 = vrot.lane.b32.xlu0 %v200, 64
  %v210 = vpop.permute.xlu0 %209
  %211 = vrot.lane.b32.xlu0 %v199, 64
  %v212 = vpop.permute.xlu0 %211
  %v219 = vadd.f32 %v110, %v202
  %v220 = vadd.f32 %v115, %v204
  %v221 = vadd.f32 %v120, %v206
  %v222 = vadd.f32 %v125, %v208
  %v223 = vadd.f32 %v130, %v210
  %v224 = vadd.f32 %v135, %v212
  %225 = vrot.lane.b32.xlu0 %v178, 64
  %v226 = vpop.permute.xlu0 %225
  %v228 = vadd.f32 %v219, %v226
  %v229 = vadd.f32 %v220, %v226
  %v230 = vadd.f32 %v221, %v226
  %v231 = vadd.f32 %v222, %v226
  %v232 = vadd.f32 %v223, %v226
  %v233 = vadd.f32 %v224, %v226
  %240 = vrot.lane.b32.xlu0 %v182, 96
  %v241 = vpop.permute.xlu0 %240
  %242 = vrot.lane.b32.xlu0 %v183, 96
  %v243 = vpop.permute.xlu0 %242
  %244 = vrot.lane.b32.xlu0 %v184, 96
  %v245 = vpop.permute.xlu0 %244
  %246 = vrot.lane.b32.xlu0 %v185, 96
  %v247 = vpop.permute.xlu0 %246
  %248 = vrot.lane.b32.xlu0 %v186, 96
  %v249 = vpop.permute.xlu0 %248
  %250 = vrot.lane.b32.xlu0 %v187, 96
  %v251 = vpop.permute.xlu0 %250
  %vm258 = vcmask 261121
  %259 = vst.msk [vmem:[%s3 - $0x1] sm:$0xfe] %vm258, %v241
  %260 = vst.msk [vmem:[%s3 + $0x7] sm:$0xff] %vm24, %v243
  %vm261 = vcmask 253952
  %262 = vst.msk [vmem:[%s3 + $0xf] sm:$0x1] %vm261, %v245
  %263 = vst.msk [vmem:[%s3 + $0x1f] sm:$0xfe] %vm258, %v247
  %264 = vst.msk [vmem:[%s3 + $0x27] sm:$0xff] %vm24, %v249
  %265 = vst.msk [vmem:[%s3 + $0x2f] sm:$0x1] %vm261, %v251
  %272 = vrot.lane.b32.xlu0 %v228, 64
  %v273 = vpop.permute.xlu0 %272
  %274 = vrot.lane.b32.xlu0 %v229, 64
  %v275 = vpop.permute.xlu0 %274
  %276 = vrot.lane.b32.xlu0 %v230, 64
  %v277 = vpop.permute.xlu0 %276
  %278 = vrot.lane.b32.xlu0 %v231, 64
  %v279 = vpop.permute.xlu0 %278
  %280 = vrot.lane.b32.xlu0 %v232, 64
  %v281 = vpop.permute.xlu0 %280
  %282 = vrot.lane.b32.xlu0 %v233, 64
  %v283 = vpop.permute.xlu0 %282
  %s290 = scalar_lea.vmem %s3, 16
  %291 = vst.msk [vmem:[%s290 - $0x1] sm:$0xfe] %vm258, %v273
  %292 = vst.msk [vmem:[%s290 + $0x7] sm:$0xff] %vm24, %v275
  %293 = vst.msk [vmem:[%s290 + $0xf] sm:$0x1] %vm261, %v277
  %294 = vst.msk [vmem:[%s290 + $0x1f] sm:$0xfe] %vm258, %v279
  %295 = vst.msk [vmem:[%s290 + $0x27] sm:$0xff] %vm24, %v281
  %296 = vst.msk [vmem:[%s290 + $0x2f] sm:$0x1] %vm261, %v283
  // Predicated region
  $region14: #{upsample1d.1} parent=0 // pred_check
    _
  $region15: #{upsample1d.1} parent=0 // pred_check_branch
    %298 = sbr.rel (0) target = $region17
  $region16: #{upsample1d.1} parent=0 // pred_region
    _
  $region17: #{upsample1d.1} parent=0 // pred_fallthru
    _
  // Predicated region
  $region18: #{upsample1d.1} parent=0 // pred_check
    _
  $region19: #{upsample1d.1} parent=0 // pred_check_branch
    %300 = sbr.rel (0) target = $region21
  $region20: #{upsample1d.1} parent=0 // pred_region
    _
  $region21: #{upsample1d.1} parent=0 // pred_fallthru
    _

</llo_original>
